<compile_context>
chip_gen: v5e
topology: v5e:2x2
jax: 0.10.0
libtpu: 0.0.40
codegen_flags: <defaults>
</compile_context>

<pallas_src>
import functools
import math

import jax
import jax.numpy as jnp
from jax.experimental import pallas as pl
from jax.experimental.pallas import tpu as pltpu


_MASK_VALUE = -1e30


def _detect_vmem_bytes():
    try:
        return int(pltpu.get_tpu_info().vmem_capacity_bytes)
    except Exception:
        return 64 * 1024 * 1024     # conservative (v7x-sized) fallback


_VMEM_CAP = _detect_vmem_bytes()
if _VMEM_CAP >= 100 * 1024 * 1024:          # v5e / v6e: 128 MiB VMEM
    _GEMM_TM, _GEMM_TN, _GEMM_TK = 512, 1024, 512
    _VMEM_LIMIT = 96 * 1024 * 1024
else:                                       # v7x: 64 MiB VMEM (or unknown)
    _GEMM_TM, _GEMM_TN, _GEMM_TK = 256, 512, 512
    _VMEM_LIMIT = 48 * 1024 * 1024


def _pick_tile(dim: int, target: int, align: int) -> int:
    """Largest `align`-multiple divisor of dim that is <= target (else full dim).

    Returning the full dim is always layout-legal; an aligned divisor keeps the
    (8, 128) tiling rule satisfied for tiled blocks.
    """
    if dim <= target:
        return dim
    t = (min(target, dim) // align) * align
    while t >= align:
        if dim % t == 0:
            return t
        t -= align
    return dim


# ---------------------------------------------------------------------------
# Tiled GEMM + bias (used for c_attn and c_proj).
# ---------------------------------------------------------------------------
def _linear_kernel(x_ref, w_ref, b_ref, o_ref, acc_ref):
    k = pl.program_id(2)

    @pl.when(k == 0)
    def _():
        acc_ref[...] = jnp.zeros_like(acc_ref)

    acc_ref[...] += jnp.dot(x_ref[...], w_ref[...],
                            preferred_element_type=jnp.float32)

    @pl.when(k == pl.num_programs(2) - 1)
    def _():
        o_ref[...] = (acc_ref[...] + b_ref[...]).astype(o_ref.dtype)


def _linear(x2d, w, b2d, *, out_dtype,
            tm=_GEMM_TM, tn=_GEMM_TN, tk=_GEMM_TK):
    M, K = x2d.shape
    _, N = w.shape
    tm = _pick_tile(M, tm, align=8)
    tn = _pick_tile(N, tn, align=128)
    tk = _pick_tile(K, tk, align=128)
    return pl.pallas_call(
        _linear_kernel,
        out_shape=jax.ShapeDtypeStruct((M, N), out_dtype),
        grid_spec=pltpu.PrefetchScalarGridSpec(
            num_scalar_prefetch=0,
            grid=(M // tm, N // tn, K // tk),
            in_specs=[
                pl.BlockSpec((tm, tk), lambda i, j, k: (i, k)),   # activations
                pl.BlockSpec((tk, tn), lambda i, j, k: (k, j)),   # weights
                pl.BlockSpec((1, tn), lambda i, j, k: (0, j)),    # bias (f32)
            ],
            out_specs=pl.BlockSpec((tm, tn), lambda i, j, k: (i, j)),
            scratch_shapes=[pltpu.VMEM((tm, tn), jnp.float32)],
        ),
        compiler_params=pltpu.CompilerParams(
            dimension_semantics=("parallel", "parallel", "arbitrary"),
            vmem_limit_bytes=_VMEM_LIMIT),
    )(x2d, w, b2d)


# ---------------------------------------------------------------------------
# Flash-style causal attention over a (B*H, T, hd) layout.
# ---------------------------------------------------------------------------
def _flash_attn_kernel(q_ref, k_ref, v_ref, o_ref, m_sc, l_sc, acc_sc,
                       *, tq, tk, exp_dtype, approx_recip):
    qi = pl.program_id(1)
    ki = pl.program_id(2)

    @pl.when(ki == 0)
    def _():
        m_sc[...] = jnp.full_like(m_sc, _MASK_VALUE)
        l_sc[...] = jnp.zeros_like(l_sc)
        acc_sc[...] = jnp.zeros_like(acc_sc)

    q_start = qi * tq
    k_start = ki * tk

    def update(s):
        # Online-softmax update; accumulation stays f32.
        m_prev = m_sc[...]
        m_new = jnp.maximum(m_prev, jnp.max(s, axis=-1, keepdims=True))
        alpha = jnp.exp(m_prev - m_new)
        # exp in bf16 on the EUP when the compute dtype is bf16 (v6e/v7x);
        # f32 otherwise (v5e or f32-parity path).
        p = jnp.exp((s - m_new).astype(exp_dtype))
        l_sc[...] = alpha * l_sc[...] + jnp.sum(
            p.astype(jnp.float32), axis=-1, keepdims=True)
        acc_sc[...] = alpha * acc_sc[...] + jnp.dot(
            p.astype(v_ref.dtype), v_ref[0], preferred_element_type=jnp.float32)
        m_sc[...] = m_new

    # Blocks fully above the causal diagonal contribute nothing: skip all
    # compute (their K/V DMAs are also elided by the clamped index_map).
    @pl.when(k_start <= q_start + (tq - 1))
    def _():
        qh = q_ref[0]                         # 1/sqrt(hd) already folded into W_q
        kh = k_ref[0]
        # QK^T without materializing kh.T: contract head dims on the MXU.
        s = jax.lax.dot_general(qh, kh, (((1,), (1,)), ((), ())),
                                preferred_element_type=jnp.float32)   # (tq, tk)

        straddles = (k_start + (tk - 1)) > q_start

        @pl.when(straddles)                    # diagonal-straddling: mask needed
        def _():
            row = q_start + jax.lax.broadcasted_iota(jnp.int32, (tq, tk), 0)
            col = k_start + jax.lax.broadcasted_iota(jnp.int32, (tq, tk), 1)
            update(jnp.where(row >= col, s, _MASK_VALUE))

        @pl.when(jnp.logical_not(straddles))   # fully below diagonal: no mask
        def _():
            update(s)

    @pl.when(ki == pl.num_programs(2) - 1)
    def _():
        o_ref[0] = (acc_sc[...] * pl.reciprocal(l_sc[...], approx=approx_recip)
                    ).astype(o_ref.dtype)


def _flash_attention(q, k, v, *, block_q, block_k, out_dtype):
    BH, T, hd = q.shape
    tq = _pick_tile(T, block_q, align=8)
    tk = _pick_tile(T, block_k, align=8)
    exp_dtype = jnp.bfloat16 if q.dtype == jnp.bfloat16 else jnp.float32
    approx_recip = bool(out_dtype == jnp.bfloat16)
    kernel = functools.partial(_flash_attn_kernel, tq=tq, tk=tk,
                               exp_dtype=exp_dtype, approx_recip=approx_recip)

    # Clamp the K/V block index to the causal diagonal: above-diagonal grid
    # steps repeat the previous block index, so Pallas elides the HBM fetch.
    def kv_index(bh, qi, ki):
        last_live = (qi * tq + (tq - 1)) // tk
        return (bh, jnp.minimum(ki, last_live), 0)

    return pl.pallas_call(
        kernel,
        out_shape=jax.ShapeDtypeStruct((BH, T, hd), out_dtype),
        grid_spec=pltpu.PrefetchScalarGridSpec(
            num_scalar_prefetch=0,
            grid=(BH, T // tq, T // tk),
            in_specs=[
                pl.BlockSpec((1, tq, hd), lambda bh, qi, ki: (bh, qi, 0)),
                pl.BlockSpec((1, tk, hd), kv_index),
                pl.BlockSpec((1, tk, hd), kv_index),
            ],
            out_specs=pl.BlockSpec((1, tq, hd), lambda bh, qi, ki: (bh, qi, 0)),
            scratch_shapes=[
                pltpu.VMEM((tq, 1), jnp.float32),     # running max m
                pltpu.VMEM((tq, 1), jnp.float32),     # running denom l
                pltpu.VMEM((tq, hd), jnp.float32),    # output accumulator
            ],
        ),
        compiler_params=pltpu.CompilerParams(
            dimension_semantics=("parallel", "parallel", "arbitrary"),
            vmem_limit_bytes=_VMEM_LIMIT),
    )(q, k, v)


# ---------------------------------------------------------------------------
# Parameter prep (done once, outside the per-call path).
# ---------------------------------------------------------------------------
def prepare_params(w_attn, b_attn, w_proj, b_proj, *, n_head,
                   compute_dtype=None):
    """Folds 1/sqrt(hd) into the Q projection and casts weights once.

    w_attn: (C, 3C) with columns ordered [q | k | v]; b_attn: (3C,);
    w_proj: (C, C); b_proj: (C,).
    """
    C = w_proj.shape[0]
    assert C % n_head == 0
    hd = C // n_head
    scale = 1.0 / math.sqrt(hd)
    col_scale = jnp.concatenate(
        [jnp.full((C,), scale, jnp.float32), jnp.ones((2 * C,), jnp.float32)])
    w_attn_s = w_attn.astype(jnp.float32) * col_scale[None, :]
    b_attn_s = b_attn.astype(jnp.float32) * col_scale

    cdt = compute_dtype if compute_dtype is not None else w_attn.dtype
    return (w_attn_s.astype(cdt),
            b_attn_s.reshape(1, -1).astype(jnp.float32),      # bias stays f32
            w_proj.astype(cdt),
            b_proj.reshape(1, -1).astype(jnp.float32))


# ---------------------------------------------------------------------------
# Full module forward.
# ---------------------------------------------------------------------------
def causal_self_attention(x, params, *, n_head, block_q=128, block_k=256):
    """x: (B, T, C); params from prepare_params. Returns (B, T, C) in x.dtype."""
    w_attn, b_attn, w_proj, b_proj = params
    B, T, C = x.shape
    assert C % n_head == 0
    hd = C // n_head
    out_dtype = x.dtype
    cdt = w_attn.dtype

    # --- c_attn ---
    qkv = _linear(x.astype(cdt).reshape(B * T, C), w_attn, b_attn,
                  out_dtype=cdt)                                   # (B*T, 3C)

    # Wrapper-side layout plumbing: split heads -> (B*H, T, hd).
    # TODO(synk): move this split (and the merge below) into the attention
    # kernel's BlockSpecs once a lane-dense 2-heads-per-step layout is in.
    qkv = qkv.reshape(B, T, 3, n_head, hd)
    q = qkv[:, :, 0].transpose(0, 2, 1, 3).reshape(B * n_head, T, hd)
    k = qkv[:, :, 1].transpose(0, 2, 1, 3).reshape(B * n_head, T, hd)
    v = qkv[:, :, 2].transpose(0, 2, 1, 3).reshape(B * n_head, T, hd)

    # --- causal flash attention ---
    y = _flash_attention(q, k, v, block_q=block_q, block_k=block_k,
                         out_dtype=cdt)

    # Merge heads back -> (B*T, C).
    y = y.reshape(B, n_head, T, hd).transpose(0, 2, 1, 3).reshape(B * T, C)

    # --- c_proj ---
    out = _linear(y, w_proj, b_proj, out_dtype=out_dtype)
    return out.reshape(B, T, C)


def _reference(x, w_attn, b_attn, w_proj, b_proj, n_head):
    """Pure-JAX reference mirroring the PyTorch forward (unscaled weights)."""
    B, T, C = x.shape
    hd = C // n_head
    qkv = x @ w_attn + b_attn                               # (B, T, 3C)
    q, k, v = jnp.split(qkv, 3, axis=2)
    q = q.reshape(B, T, n_head, hd).transpose(0, 2, 1, 3)
    k = k.reshape(B, T, n_head, hd).transpose(0, 2, 1, 3)
    v = v.reshape(B, T, n_head, hd).transpose(0, 2, 1, 3)
    att = (q @ jnp.swapaxes(k, -2, -1)) * (1.0 / math.sqrt(hd))
    mask = jnp.tril(jnp.ones((T, T), dtype=bool))
    att = jnp.where(mask[None, None], att, -jnp.inf)
    att = jax.nn.softmax(att, axis=-1)
    y = att @ v
    y = y.transpose(0, 2, 1, 3).reshape(B, T, C)
    return y @ w_proj + b_proj


if __name__ == "__main__":
    # Small GPT-ish config: n_embd=32, n_head=4, seq=8, batch=2.
    B, T, C, n_head = 2, 8, 32, 4

    key = jax.random.PRNGKey(0)
    kx, k1, k2, k3, k4 = jax.random.split(key, 5)

    x = jax.random.normal(kx, (B, T, C), dtype=jnp.float32)
    w_attn = jax.random.normal(k1, (C, 3 * C), dtype=jnp.float32) * 0.02
    b_attn = jax.random.normal(k2, (3 * C,), dtype=jnp.float32) * 0.02
    w_proj = jax.random.normal(k3, (C, C), dtype=jnp.float32) * 0.02
    b_proj = jax.random.normal(k4, (C,), dtype=jnp.float32) * 0.02

    ref = _reference(x, w_attn, b_attn, w_proj, b_proj, n_head)

    # f32 path (exact reciprocal, f32 exp).
    params_f32 = prepare_params(w_attn, b_attn, w_proj, b_proj, n_head=n_head)
    out = causal_self_attention(x, params_f32, n_head=n_head)
    out = jax.block_until_ready(out)
    assert out.shape == (B, T, C)
    assert jnp.allclose(out, ref, atol=1e-3, rtol=1e-3), "f32 mismatch vs reference"

    # bf16 MXU operands + bf16 exp, f32 accumulation (looser tolerance).
    params_bf16 = prepare_params(w_attn, b_attn, w_proj, b_proj, n_head=n_head,
                                 compute_dtype=jnp.bfloat16)
    out_bf16 = causal_self_attention(x, params_bf16, n_head=n_head)
    out_bf16 = jax.block_until_ready(out_bf16)
    assert jnp.allclose(out_bf16.astype(jnp.float32), ref,
                        atol=3e-2, rtol=3e-2), "bf16 mismatch vs reference"

    # Larger shape: exercises multi-block q/kv tiling, the clamped-DMA causal
    # skip, the unmasked (fully-below-diagonal) fast path, and tiled GEMMs.
    B2, T2, C2, H2 = 2, 512, 128, 2
    keys = jax.random.split(jax.random.PRNGKey(1), 5)
    x2 = jax.random.normal(keys[0], (B2, T2, C2), dtype=jnp.float32)
    wa2 = jax.random.normal(keys[1], (C2, 3 * C2), dtype=jnp.float32) * 0.02
    ba2 = jax.random.normal(keys[2], (3 * C2,), dtype=jnp.float32) * 0.02
    wp2 = jax.random.normal(keys[3], (C2, C2), dtype=jnp.float32) * 0.02
    bp2 = jax.random.normal(keys[4], (C2,), dtype=jnp.float32) * 0.02
    params2 = prepare_params(wa2, ba2, wp2, bp2, n_head=H2)
    out2 = jax.block_until_ready(
        causal_self_attention(x2, params2, n_head=H2))
    ref2 = _reference(x2, wa2, ba2, wp2, bp2, H2)
    assert jnp.allclose(out2, ref2, atol=1e-3, rtol=1e-3), "tiled-path mismatch"

    print("KERNEL_OK")
</pallas_src>

<mosaic_0001>
module attributes {stable_mosaic.version = 11 : i64} {
  func.func @_linear_kernel(%arg0: i32, %arg1: i32, %arg2: i32, %arg3: memref<16x32xf32, #tpu.memory_space<vmem>>, %arg4: memref<32x96xf32, #tpu.memory_space<vmem>>, %arg5: memref<1x96xf32, #tpu.memory_space<vmem>>, %arg6: memref<16x96xf32, #tpu.memory_space<vmem>>, %arg7: memref<16x96xf32, #tpu.memory_space<vmem>>) attributes {dimension_semantics = [#tpu.dimension_semantics<parallel>, #tpu.dimension_semantics<parallel>, #tpu.dimension_semantics<arbitrary>], iteration_bounds = array<i64: 1, 1, 1>, scalar_prefetch = 0 : i64, scratch_operands = 1 : i64, tpu.core_type = #tpu.core_type<tc>, window_params = [{transform_indices = @transform_0, window_bounds = array<i64: 16, 32>}, {transform_indices = @transform_1, window_bounds = array<i64: 32, 96>}, {transform_indices = @transform_2, window_bounds = array<i64: 1, 96>}, {transform_indices = @transform_3, window_bounds = array<i64: 16, 96>}]} {
    %c0_i32 = arith.constant 0 : i32
    %0 = arith.cmpi eq, %arg2, %c0_i32 : i32
    %1 = arith.extui %0 : i1 to i32
    %c0_i32_0 = arith.constant 0 : i32
    %2 = arith.cmpi ne, %1, %c0_i32_0 : i32
    scf.if %2 {
      %cst_10 = arith.constant 0.000000e+00 : f32
      %12 = vector.broadcast %cst_10 : f32 to vector<16x96xf32>
      %c0_11 = arith.constant 0 : index
      %c0_12 = arith.constant 0 : index
      %13 = vector.load %arg7[%c0_11, %c0_12] : memref<16x96xf32, #tpu.memory_space<vmem>>, vector<16x96xf32>
      tpu.vector_store %arg7[%c0_11, %c0_12], %12 {strides = array<i32>} : memref<16x96xf32, #tpu.memory_space<vmem>>, vector<16x96xf32>,
    } else {
    }
    %c0 = arith.constant 0 : index
    %c0_1 = arith.constant 0 : index
    %3 = vector.load %arg7[%c0, %c0_1] : memref<16x96xf32, #tpu.memory_space<vmem>>, vector<16x96xf32>
    %c0_2 = arith.constant 0 : index
    %c0_3 = arith.constant 0 : index
    %4 = vector.load %arg3[%c0_2, %c0_3] : memref<16x32xf32, #tpu.memory_space<vmem>>, vector<16x32xf32>
    %c0_4 = arith.constant 0 : index
    %c0_5 = arith.constant 0 : index
    %5 = vector.load %arg4[%c0_4, %c0_5] : memref<32x96xf32, #tpu.memory_space<vmem>>, vector<32x96xf32>
    %cst = arith.constant dense<0.000000e+00> : vector<16x96xf32>
    %6 = tpu.matmul %4, %5, %cst {dimension_numbers = #tpu.dot_dimension_numbers<[1], [0], [0], [1], [0, 0, 1, 1], [], []>} : vector<16x32xf32>, vector<32x96xf32>, vector<16x96xf32> -> vector<16x96xf32>
    %7 = arith.addf %3, %6 : vector<16x96xf32>
    %c0_6 = arith.constant 0 : index
    %c0_7 = arith.constant 0 : index
    %8 = vector.load %arg7[%c0_6, %c0_7] : memref<16x96xf32, #tpu.memory_space<vmem>>, vector<16x96xf32>
    tpu.vector_store %arg7[%c0_6, %c0_7], %7 {strides = array<i32>} : memref<16x96xf32, #tpu.memory_space<vmem>>, vector<16x96xf32>,
    %c0_i32_8 = arith.constant 0 : i32
    %9 = arith.cmpi eq, %arg2, %c0_i32_8 : i32
    %10 = arith.extui %9 : i1 to i32
    %c0_i32_9 = arith.constant 0 : i32
    %11 = arith.cmpi ne, %10, %c0_i32_9 : i32
    scf.if %11 {
      %c0_10 = arith.constant 0 : index
      %c0_11 = arith.constant 0 : index
      %12 = vector.load %arg7[%c0_10, %c0_11] : memref<16x96xf32, #tpu.memory_space<vmem>>, vector<16x96xf32>
      %c0_12 = arith.constant 0 : index
      %c0_13 = arith.constant 0 : index
      %13 = vector.load %arg5[%c0_12, %c0_13] : memref<1x96xf32, #tpu.memory_space<vmem>>, vector<1x96xf32>
      %14 = vector.broadcast %13 : vector<1x96xf32> to vector<16x96xf32>
      %15 = arith.addf %12, %14 : vector<16x96xf32>
      %c0_14 = arith.constant 0 : index
      %c0_15 = arith.constant 0 : index
      %16 = vector.load %arg6[%c0_14, %c0_15] : memref<16x96xf32, #tpu.memory_space<vmem>>, vector<16x96xf32>
      tpu.vector_store %arg6[%c0_14, %c0_15], %15 {strides = array<i32>} : memref<16x96xf32, #tpu.memory_space<vmem>>, vector<16x96xf32>,
    } else {
    }
    return
  }
  func.func @transform_0(%arg0: i32, %arg1: i32, %arg2: i32) -> (i32, i32) {
    %c0_i32 = arith.constant 0 : i32
    return %arg0, %arg2 : i32, i32
  }
  func.func @transform_1(%arg0: i32, %arg1: i32, %arg2: i32) -> (i32, i32) {
    %c0_i32 = arith.constant 0 : i32
    return %arg2, %arg1 : i32, i32
  }
  func.func @transform_2(%arg0: i32, %arg1: i32, %arg2: i32) -> (i32, i32) {
    %c0_i32 = arith.constant 0 : i32
    %c0_i32_0 = arith.constant 0 : i32
    return %c0_i32, %arg1 : i32, i32
  }
  func.func @transform_3(%arg0: i32, %arg1: i32, %arg2: i32) -> (i32, i32) {
    %c0_i32 = arith.constant 0 : i32
    return %arg0, %arg1 : i32, i32
  }
}

</mosaic_0001>

<llo_original>
// kernel: tpu_custom_call.1
$region0: #{tpu_custom_call.1}
  #allocation0 [shape = 'u32[]', space=smem, size = 0x4, offset = 0x4, fixed_abs, tag = 'smem constant byte address 0x4 - core index']
  #allocation1 [shape = 'u32[72,128]{1,0:T(1,128)}', space=vmem, size = 0x9000, scoped, tag = 'internal scratch']
  #allocation2 [shape = 'f32[16,96]{1,0:T(8,128)}', space=vmem, size = 0x2000, scoped, tag = 'scratch operand']
  %s0 = inlined_call_operand.hbm [shape: f32[16,32], index: 0, kind: input, shape index: {}]
  %s1 = inlined_call_operand.hbm [shape: f32[32,96], index: 1, kind: input, shape index: {}]
  %s2 = inlined_call_operand.vmem [shape: f32[1,96], index: 2, kind: input, shape index: {}]
  %s3 = inlined_call_operand.hbm [shape: f32[16,96], index: 3, kind: output, shape index: {}]
  %s4 = sld [smem:[#allocation0]]
  $region38: #{tpu_custom_call.1} parent=0
    _
  %s6 = ssub.s32 1, %s4
  %s7 = scalar_select 0, %s6, %s4
  $region1: #{tpu_custom_call.1} parent=0
    #allocation3 [shape = 'u8[8192]{0}', space=vmem, size = 0x2000, scoped, tag = 'input window, operand 0, single buffered']
    #allocation4 [shape = 's32[1]{0}', space=sflag, size = 0x4, scoped, tag = 'scoped memory for tpu_custom_call.1']
    #allocation5 [shape = 's32[1]{0}', space=sflag, size = 0x4, scoped, tag = 'scoped memory for tpu_custom_call.1']
    #allocation6 [shape = 'u8[16384]{0}', space=vmem, size = 0x4000, scoped, tag = 'input window, operand 1, single buffered']
    #allocation7 [shape = 's32[1]{0}', space=sflag, size = 0x4, scoped, tag = 'scoped memory for tpu_custom_call.1']
    #allocation8 [shape = 'u8[8192]{0}', space=vmem, size = 0x2000, scoped, tag = 'output window, operand 0, single buffered']
    %8 = vsyncpa [#allocation4], 0
    %9 = vsyncpa [#allocation7], 0
    %10 = vsyncpa [#allocation5], 0
    // Predicated region
    $region2: #{tpu_custom_call.1} parent=1 // pred_check
      _
    $region3: #{tpu_custom_call.1} parent=1 // pred_check_branch
      %12 = sbr.rel (0) target = $region5
    $region4: #{tpu_custom_call.1} parent=1 // pred_region
      %14 = vsyncadd [#allocation4], 0
      %s15 = sshll.u32 %s0, 4
      %s16 = int_to_ptr.hbm [resolvable:$true] %s15
      %s17 = sshll.u32 [#allocation3], 4
      %s18 = int_to_ptr.vmem [resolvable:$true] %s17
      %23 = dma.hbm_to_vmem [thread:$0]  %s16, 256, %s18, [#allocation4], 128, 128, 8
    $region5: #{tpu_custom_call.1} parent=1 // pred_fallthru
      _
    // Predicated region
    $region6: #{tpu_custom_call.1} parent=1 // pred_check
      _
    $region7: #{tpu_custom_call.1} parent=1 // pred_check_branch
      %25 = sbr.rel (0) target = $region9
    $region8: #{tpu_custom_call.1} parent=1 // pred_region
      %27 = vsyncadd [#allocation7], 0
      %s28 = sshll.u32 %s1, 4
      %s29 = int_to_ptr.hbm [resolvable:$true] %s28
      %s30 = sshll.u32 [#allocation6], 4
      %s31 = int_to_ptr.vmem [resolvable:$true] %s30
      %36 = dma.hbm_to_vmem [thread:$0]  %s29, 512, %s31, [#allocation7], 128, 128, 8
    $region9: #{tpu_custom_call.1} parent=1 // pred_fallthru
      _
    // Predicated region
    $region10: #{tpu_custom_call.1} parent=1 // pred_check
      _
    $region11: #{tpu_custom_call.1} parent=1 // pred_check_branch
      %38 = sbr.rel (0) target = $region13
    $region12: #{tpu_custom_call.1} parent=1 // pred_region
      _
    $region13: #{tpu_custom_call.1} parent=1 // pred_fallthru
      _
    // Predicated region
    $region14: #{tpu_custom_call.1} parent=1 // pred_check
      _
    $region15: #{tpu_custom_call.1} parent=1 // pred_check_branch
      %40 = sbr.rel (0) target = $region17
    $region16: #{tpu_custom_call.1} parent=1 // pred_region
      %42 = dma.done [#allocation4], 256
    $region17: #{tpu_custom_call.1} parent=1 // pred_fallthru
      _
    // Predicated region
    $region18: #{tpu_custom_call.1} parent=1 // pred_check
      _
    $region19: #{tpu_custom_call.1} parent=1 // pred_check_branch
      %44 = sbr.rel (0) target = $region21
    $region20: #{tpu_custom_call.1} parent=1 // pred_region
      %46 = dma.done [#allocation7], 512
    $region21: #{tpu_custom_call.1} parent=1 // pred_fallthru
      _
    %p47 = scmp.eq.s32.totalorder 0, 0
    // Predicated region
    $region22: #{tpu_custom_call.1} parent=1 // pred_check
      %p48 = pneg %p47
    $region23: #{tpu_custom_call.1} parent=1 // pred_check_branch
      %50 = sbr.rel (%p48) target = $region25
    $region24: #{tpu_custom_call.1} parent=1 // pred_region
      %vm51 = vcmask 785408
      %52 = vst.msk [vmem:[#allocation2] sm:$0xff] %vm51, 0.0
      %53 = vst.msk [vmem:[#allocation2 + $0x8] sm:$0xff] %vm51, 0.0
    $region25: #{tpu_custom_call.1} parent=1 // pred_fallthru
      _
    %v54 = vld [vmem:[#allocation2] sm:$0xff]
    %v55 = vld [vmem:[#allocation2 + $0x8] sm:$0xff]
    %v56 = vld [vmem:[#allocation3] sm:$0xff]
    %v57 = vld [vmem:[#allocation3 + $0x8] sm:$0xff]
    %v58 = vld [vmem:[#allocation6] sm:$0xff]
    %v59 = vld [vmem:[#allocation6 + $0x8] sm:$0xff]
    %v60 = vld [vmem:[#allocation6 + $0x10] sm:$0xff]
    %v61 = vld [vmem:[#allocation6 + $0x18] sm:$0xff]
    %vm62 = vcmask 261120
    %v64 = vsel %vm62, %v56, 0
    %v67 = vsel %vm62, %v57, 0
    %69 = vmatpush.msra.mxu0 0.0
    %70 = vmatpush.msra.mxu0 0.0
    %71 = vmatpush.msra.mxu0 0.0
    %72 = vmatpush.msra.mxu0 0.0
    %73 = vmatpush.msra.mxu0 0.0
    %74 = vmatpush.msra.mxu0 0.0
    %75 = vmatpush.msra.mxu0 0.0
    %76 = vmatpush.msra.mxu0 0.0
    %77 = vmatpush.msra.mxu0 0.0
    %78 = vmatpush.msra.mxu0 0.0
    %79 = vmatpush.msra.mxu0 0.0
    %80 = vmatpush.msra.mxu0 0.0
    %81 = vmatpush.msra.mxu0 %v61
    %82 = vmatpush.msra.mxu0 %v60
    %83 = vmatpush.msra.mxu0 %v59
    %84 = vmatpush.msra.mxu0 %v58
    %85 = vmatmul.f32.gmra.mxu0 %v64
    %v86 = vpop.f32.mrf.mxu0
    %v87 = vadd.f32 0.0, %v86
    %88 = vmatmul.f32.gmra.mxu0 %v67
    %v89 = vpop.f32.mrf.mxu0
    %v90 = vadd.f32 0.0, %v89
    %91 = vdwg.mxu0
    %v92 = vadd.f32 %v54, %v87
    %v93 = vadd.f32 %v55, %v90
    %vm94 = vcmask 785408
    %95 = vst.msk [vmem:[#allocation2] sm:$0xff] %vm94, %v92
    %96 = vst.msk [vmem:[#allocation2 + $0x8] sm:$0xff] %vm94, %v93
    // Predicated region
    $region26: #{tpu_custom_call.1} parent=1 // pred_check
      %p97 = pneg %p47
    $region27: #{tpu_custom_call.1} parent=1 // pred_check_branch
      %99 = sbr.rel (%p97) target = $region29
    $region28: #{tpu_custom_call.1} parent=1 // pred_region
      %v100 = vld [vmem:[#allocation2] sm:$0xff]
      %v101 = vld [vmem:[#allocation2 + $0x8] sm:$0xff]
      %v102 = vld [vmem:[%s2] sm:$0x1]
      %v104 = vperm.slane %v102, 0
      %v106 = vadd.f32 %v100, %v104
      %v107 = vadd.f32 %v101, %v104
      %108 = vst.msk [vmem:[#allocation8] sm:$0xff] %vm94, %v106
      %109 = vst.msk [vmem:[#allocation8 + $0x8] sm:$0xff] %vm94, %v107
    $region29: #{tpu_custom_call.1} parent=1 // pred_fallthru
      _
    // Predicated region
    $region30: #{tpu_custom_call.1} parent=1 // pred_check
      _
    $region31: #{tpu_custom_call.1} parent=1 // pred_check_branch
      %111 = sbr.rel (0) target = $region33
    $region32: #{tpu_custom_call.1} parent=1 // pred_region
      %113 = vsyncadd [#allocation5], 0
      %s114 = sshll.u32 [#allocation8], 4
      %s115 = int_to_ptr.vmem [resolvable:$true] %s114
      %s116 = sshll.u32 %s3, 4
      %s117 = int_to_ptr.hbm [resolvable:$true] %s116
      %122 = dma.vmem_to_hbm [thread:$0]  %s115, 256, %s117, [#allocation5], 128, 128, 8
    $region33: #{tpu_custom_call.1} parent=1 // pred_fallthru
      _
    // Predicated region
    $region34: #{tpu_custom_call.1} parent=1 // pred_check
      _
    $region35: #{tpu_custom_call.1} parent=1 // pred_check_branch
      %124 = sbr.rel (0) target = $region37
    $region36: #{tpu_custom_call.1} parent=1 // pred_region
      %126 = dma.done [#allocation5], 256
    $region37: #{tpu_custom_call.1} parent=1 // pred_fallthru
      _
    %127 = vsyncpa [#allocation4], 1
    %128 = vsyncpa [#allocation7], 1
    %129 = vsyncpa [#allocation5], 1

</llo_original>
